<compile_context>
chip_gen: v6e
topology: v6e:2x2x1
jax: 0.10.0
libtpu: 0.0.40
codegen_flags: <defaults>
</compile_context>

<pallas_src>
import functools

import jax
import jax.numpy as jnp
from jax.experimental import pallas as pl
from jax.experimental.pallas import tpu as pltpu

SNR_DEFAULT = 12.0
_LANE = 128


# ------------------------------ sizing helpers ------------------------------

def _sublane_for(dtype) -> int:
    """Sublane packing for a dtype: f32 -> 8, bf16 -> 16, int8/fp8 -> 32."""
    return max(8, 32 // max(jnp.dtype(dtype).itemsize, 1))


def _vmem_budgets():
    """(vmem_limit_bytes, fused_nominal_limit, tile_bytes), generation-aware."""
    try:
        cap = getattr(pltpu.get_tpu_info(), "vmem_capacity_bytes", 64 << 20)
    except Exception:                      # non-TPU tracing / older runtimes
        cap = 64 << 20
    vmem_limit = min(int(cap * 3 // 4), 128 << 20)   # leave compiler headroom
    fused_limit = vmem_limit // 6     # nominal f32 bytes; true footprint ~4-5x
    tile_bytes = min(4 << 20, vmem_limit // 12)      # double-buffered tiles
    return vmem_limit, fused_limit, tile_bytes


def _as_2d(x):
    """Free reshape of x to a lane-friendly 2D view.  Never pads or copies."""
    total = x.size
    for cols in (4 * _LANE, 2 * _LANE, _LANE):       # prefer lane-dense stores
        if total % cols == 0:
            return x.reshape(total // cols, cols)
    if x.ndim >= 2:
        return x.reshape(-1, x.shape[-1])
    return x.reshape(1, total)


# ------------------------- fused single-block kernels ------------------------

def _fused_awgn_hw_kernel(seed_ref, x_ref, o_ref, *, inv_denom):
    """Whole tensor resident in VMEM: sum(x^2) -> sigma -> x + noise * sigma."""
    xv = x_ref[...].astype(jnp.float32)
    sigma = jnp.sqrt(jnp.sum(xv * xv) * inv_denom)    # computed exactly once
    pltpu.prng_seed(seed_ref[0])
    noise = pltpu.stateful_normal(x_ref.shape, jnp.float32)
    o_ref[...] = (xv + noise * sigma).astype(o_ref.dtype)


def _fused_awgn_ext_kernel(x_ref, n_ref, o_ref, *, inv_denom):
    """Fused path with externally supplied standard-normal noise (non-TPU)."""
    xv = x_ref[...].astype(jnp.float32)
    sigma = jnp.sqrt(jnp.sum(xv * xv) * inv_denom)
    o_ref[...] = (xv + n_ref[...].astype(jnp.float32) * sigma).astype(o_ref.dtype)


# ----------------------------- tiled two-pass path ---------------------------

def _sigma_kernel(x_ref, sigma_ref, acc_ref, *, inv_denom, rows):
    """Pass 1: accumulate sum(x^2) in a tile-shaped VMEM accumulator (VPU adds);
    cross-lane reduce to the scalar sigma only on the last grid step."""
    i = pl.program_id(0)

    @pl.when(i == 0)
    def _():
        acc_ref[...] = jnp.zeros_like(acc_ref)

    xv = x_ref[...].astype(jnp.float32)
    tm = x_ref.shape[0]
    if rows % tm:                               # ragged tail: mask OOB rows
        row_ids = i * tm + jax.lax.broadcasted_iota(jnp.int32, x_ref.shape, 0)
        xv = jnp.where(row_ids < rows, xv, 0.0)
    acc_ref[...] += xv * xv

    @pl.when(i == pl.num_programs(0) - 1)
    def _():
        sigma_ref[0, 0] = jnp.sqrt(jnp.sum(acc_ref[...]) * inv_denom)


def _apply_hw_kernel(seed_ref, sigma_ref, x_ref, o_ref):
    """Pass 2 (TPU): on-chip Gaussian noise, y = x + noise * sigma.  Tile id is
    mixed in as a second hardware seed word so per-tile streams decorrelate."""
    pltpu.prng_seed(seed_ref[0], pl.program_id(0))
    noise = pltpu.stateful_normal(x_ref.shape, jnp.float32)
    o_ref[...] = (x_ref[...].astype(jnp.float32)
                  + noise * sigma_ref[0, 0]).astype(o_ref.dtype)


def _apply_ext_kernel(sigma_ref, x_ref, n_ref, o_ref):
    """Pass 2 (non-TPU fallback): precomputed standard-normal noise."""
    o_ref[...] = (x_ref[...].astype(jnp.float32)
                  + n_ref[...].astype(jnp.float32) * sigma_ref[0, 0]
                  ).astype(o_ref.dtype)


# ---------------------------------- wrapper ----------------------------------

def awgn_channel(x, seed, snr=SNR_DEFAULT, *, _force_tiled=False,
                 _max_tile_rows=None):
    """Pallas AWGN channel: y = x + N(0, mean(x^2) / 10**(snr/10)).

    x: float array of any shape (UDeepSC uses (B, N, 16) channel symbols).
    seed: python int / int32 scalar; advance per call for fresh noise.
    """
    snr_factor = 10.0 ** (snr / 10.0)
    total = x.size
    inv_denom = 1.0 / (float(total) * snr_factor)   # mean + SNR folded once
    orig_shape = x.shape

    vmem_limit, fused_limit, tile_bytes = _vmem_budgets()
    x2 = _as_2d(x)
    rows, cols = x2.shape
    sublane = _sublane_for(x.dtype)
    use_hw_prng = jax.default_backend() == "tpu"

    # Fused single-pass path: one HBM read + one HBM write, sigma/noise/add in
    # one dispatch.  Also forced when there are too few rows to tile.
    # TODO(synk): a huge tensor whose size has no 128 divisor AND too few rows
    # to tile would overflow VMEM here; this never occurs in UDeepSC.
    fused = (not _force_tiled and 4 * total <= fused_limit) or rows < 2 * sublane

    if fused:
        common = dict(
            out_shape=jax.ShapeDtypeStruct((rows, cols), x.dtype),
            grid=(1,),
            out_specs=pl.BlockSpec((rows, cols), lambda i: (0, 0)),
            compiler_params=pltpu.CompilerParams(
                dimension_semantics=("arbitrary",),
                vmem_limit_bytes=vmem_limit),
        )
        if use_hw_prng:
            seed_arr = jnp.asarray([seed], dtype=jnp.int32)
            y2 = pl.pallas_call(
                functools.partial(_fused_awgn_hw_kernel, inv_denom=inv_denom),
                in_specs=[pl.BlockSpec(memory_space=pltpu.SMEM),           # seed
                          pl.BlockSpec((rows, cols), lambda i: (0, 0))],   # x
                **common,
            )(seed_arr, x2)
        else:
            noise = jax.random.normal(jax.random.PRNGKey(seed),
                                      (rows, cols), x.dtype)
            y2 = pl.pallas_call(
                functools.partial(_fused_awgn_ext_kernel, inv_denom=inv_denom),
                in_specs=[pl.BlockSpec((rows, cols), lambda i: (0, 0)),
                          pl.BlockSpec((rows, cols), lambda i: (0, 0))],
                **common,
            )(x2, noise)
        return y2.reshape(orig_shape)

    # ---- tiled two-pass path for tensors too large to hold in VMEM ----
    tm = max(sublane, (tile_bytes // (cols * 4)) // sublane * sublane)
    if _max_tile_rows is not None:                     # test-only override
        tm = max(sublane, _max_tile_rows // sublane * sublane)
    tm = min(tm, pl.cdiv(rows, sublane) * sublane)
    grid = (pl.cdiv(rows, tm),)

    # Pass 1: sigma = sqrt(sum(x^2) * inv_denom); sequential reduction axis.
    sigma = pl.pallas_call(
        functools.partial(_sigma_kernel, inv_denom=inv_denom, rows=rows),
        out_shape=jax.ShapeDtypeStruct((1, 1), jnp.float32),
        grid=grid,
        in_specs=[pl.BlockSpec((tm, cols), lambda i: (i, 0))],
        out_specs=pl.BlockSpec(memory_space=pltpu.SMEM),
        scratch_shapes=[pltpu.VMEM((tm, cols), jnp.float32)],
        compiler_params=pltpu.CompilerParams(
            dimension_semantics=("arbitrary",),
            vmem_limit_bytes=vmem_limit),
    )(x2)

    # Pass 2: independent elementwise tiles -> "parallel" (v7x megacore splits
    # the streaming across both TensorCores).
    if use_hw_prng:
        seed_arr = jnp.asarray([seed], dtype=jnp.int32)
        y2 = pl.pallas_call(
            _apply_hw_kernel,
            out_shape=jax.ShapeDtypeStruct((rows, cols), x.dtype),
            grid=grid,
            in_specs=[pl.BlockSpec(memory_space=pltpu.SMEM),           # seed
                      pl.BlockSpec(memory_space=pltpu.SMEM),           # sigma
                      pl.BlockSpec((tm, cols), lambda i: (i, 0))],     # x
            out_specs=pl.BlockSpec((tm, cols), lambda i: (i, 0)),
            compiler_params=pltpu.CompilerParams(
                dimension_semantics=("parallel",),
                vmem_limit_bytes=vmem_limit),
        )(seed_arr, sigma, x2)
    else:
        noise = jax.random.normal(jax.random.PRNGKey(seed), (rows, cols), x.dtype)
        y2 = pl.pallas_call(
            _apply_ext_kernel,
            out_shape=jax.ShapeDtypeStruct((rows, cols), x.dtype),
            grid=grid,
            in_specs=[pl.BlockSpec(memory_space=pltpu.SMEM),           # sigma
                      pl.BlockSpec((tm, cols), lambda i: (i, 0)),      # x
                      pl.BlockSpec((tm, cols), lambda i: (i, 0))],     # noise
            out_specs=pl.BlockSpec((tm, cols), lambda i: (i, 0)),
            compiler_params=pltpu.CompilerParams(
                dimension_semantics=("parallel",),
                vmem_limit_bytes=vmem_limit),
        )(sigma, x2, noise)

    return y2.reshape(orig_shape)


if __name__ == "__main__":
    key = jax.random.PRNGKey(0)
    k1, k2 = jax.random.split(key)
    snr_factor = 10.0 ** (SNR_DEFAULT / 10.0)

    # Main UDeepSC-style case: exercises the fused single-pass path.
    x = jax.random.normal(k1, (2, 4, 16, 16), dtype=jnp.float32)
    y = jax.block_until_ready(awgn_channel(x, seed=1234, snr=SNR_DEFAULT))
    assert y.shape == x.shape and y.dtype == x.dtype
    assert bool(jnp.all(jnp.isfinite(y)))
    exp_np = float(jnp.mean(x ** 2)) / snr_factor
    got_np = float(jnp.mean((y - x) ** 2))
    assert 0.4 * exp_np < got_np < 2.5 * exp_np, (exp_np, got_np)

    # Channel-symbol shaped case, forced through the tiled two-pass path with
    # tiny tiles so ragged-tail masking, multi-step accumulation, per-tile PRNG
    # seeding and the parallel apply pass are all exercised.
    xb = jax.random.normal(k2, (2, 100, 16), dtype=jnp.float32)
    yb = jax.block_until_ready(
        awgn_channel(xb, seed=4321, snr=SNR_DEFAULT,
                     _force_tiled=True, _max_tile_rows=8))
    assert yb.shape == xb.shape and yb.dtype == xb.dtype
    assert bool(jnp.all(jnp.isfinite(yb)))
    exp_np = float(jnp.mean(xb ** 2)) / snr_factor
    got_np = float(jnp.mean((yb - xb) ** 2))
    assert 0.4 * exp_np < got_np < 2.5 * exp_np, (exp_np, got_np)

    print("KERNEL_OK")
</pallas_src>

<mosaic_0001>
module attributes {stable_mosaic.version = 11 : i64} {
  func.func @_fused_awgn_ext_kernel(%arg0: i32, %arg1: memref<4x512xf32, #tpu.memory_space<vmem>>, %arg2: memref<4x512xf32, #tpu.memory_space<vmem>>, %arg3: memref<4x512xf32, #tpu.memory_space<vmem>>) attributes {dimension_semantics = [#tpu.dimension_semantics<arbitrary>], iteration_bounds = array<i64: 1>, scalar_prefetch = 0 : i64, scratch_operands = 0 : i64, tpu.core_type = #tpu.core_type<tc>, window_params = [{pipeline_mode = #tpu.pipeline_mode<synchronous>, transform_indices = @transform_0, window_bounds = array<i64: 4, 512>}, {pipeline_mode = #tpu.pipeline_mode<synchronous>, transform_indices = @transform_1, window_bounds = array<i64: 4, 512>}, {pipeline_mode = #tpu.pipeline_mode<synchronous>, transform_indices = @transform_2, window_bounds = array<i64: 4, 512>}]} {
    %c0 = arith.constant 0 : index
    %c0_0 = arith.constant 0 : index
    %0 = vector.load %arg1[%c0, %c0_0] : memref<4x512xf32, #tpu.memory_space<vmem>>, vector<4x512xf32>
    %1 = arith.mulf %0, %0 : vector<4x512xf32>
    %2 = vector.shape_cast %1 : vector<4x512xf32> to vector<1x4x512xf32>
    %cst = arith.constant dense<0.000000e+00> : vector<1xf32>
    %3 = vector.multi_reduction <add>, %2, %cst [1, 2] : vector<1x4x512xf32> to vector<1xf32>
    %4 = vector.shape_cast %3 : vector<1xf32> to vector<1x1x1xf32>
    %5 = vector.extract %4[0, 0, 0] : f32 from vector<1x1x1xf32>
    %cst_1 = arith.constant 3.08084636E-5 : f32
    %6 = arith.mulf %5, %cst_1 : f32
    %7 = math.sqrt %6 : f32
    %c0_2 = arith.constant 0 : index
    %c0_3 = arith.constant 0 : index
    %8 = vector.load %arg2[%c0_2, %c0_3] : memref<4x512xf32, #tpu.memory_space<vmem>>, vector<4x512xf32>
    %9 = vector.broadcast %7 : f32 to vector<4x512xf32>
    %10 = arith.mulf %8, %9 : vector<4x512xf32>
    %11 = arith.addf %0, %10 : vector<4x512xf32>
    %c0_4 = arith.constant 0 : index
    %c0_5 = arith.constant 0 : index
    %12 = vector.load %arg3[%c0_4, %c0_5] : memref<4x512xf32, #tpu.memory_space<vmem>>, vector<4x512xf32>
    tpu.vector_store %arg3[%c0_4, %c0_5], %11 {strides = array<i32>} : memref<4x512xf32, #tpu.memory_space<vmem>>, vector<4x512xf32>,
    return
  }
  func.func @transform_0(%arg0: i32) -> (i32, i32) {
    %c0_i32 = arith.constant 0 : i32
    %c0_i32_0 = arith.constant 0 : i32
    %c0_i32_1 = arith.constant 0 : i32
    return %c0_i32, %c0_i32_0 : i32, i32
  }
  func.func @transform_1(%arg0: i32) -> (i32, i32) {
    %c0_i32 = arith.constant 0 : i32
    %c0_i32_0 = arith.constant 0 : i32
    %c0_i32_1 = arith.constant 0 : i32
    return %c0_i32, %c0_i32_0 : i32, i32
  }
  func.func @transform_2(%arg0: i32) -> (i32, i32) {
    %c0_i32 = arith.constant 0 : i32
    %c0_i32_0 = arith.constant 0 : i32
    %c0_i32_1 = arith.constant 0 : i32
    return %c0_i32, %c0_i32_0 : i32, i32
  }
}

</mosaic_0001>

<llo_original>
// kernel: tpu_custom_call.1
$region0: #{tpu_custom_call.1}
  #allocation0 [shape = 'u32[]', space=smem, size = 0x4, offset = 0x4, fixed_abs, tag = 'smem constant byte address 0x4 - core index']
  #allocation1 [shape = 'u32[144,128]{1,0:T(1,128)}', space=vmem, size = 0x12000, scoped, tag = 'internal scratch']
  %s0 = inlined_call_operand.hbm [shape: f32[4,512], index: 0, kind: input, shape index: {}]
  %s1 = inlined_call_operand.hbm [shape: f32[4,512], index: 1, kind: input, shape index: {}]
  %s2 = inlined_call_operand.hbm [shape: f32[4,512], index: 2, kind: output, shape index: {}]
  %s3 = sld [smem:[#allocation0]]
  $region26: #{tpu_custom_call.1} parent=0
    _
  %s5 = ssub.s32 1, %s3
  %s6 = scalar_select 0, %s5, %s3
  $region1: #{tpu_custom_call.1} parent=0
    #allocation2 [shape = 'u8[8192]{0}', space=vmem, size = 0x2000, scoped, tag = 'input window, operand 0, single buffered']
    #allocation3 [shape = 's32[1]{0}', space=sflag, size = 0x4, scoped, tag = 'scoped memory for tpu_custom_call.1']
    #allocation4 [shape = 's32[1]{0}', space=sflag, size = 0x4, scoped, tag = 'scoped memory for tpu_custom_call.1']
    #allocation5 [shape = 'u8[8192]{0}', space=vmem, size = 0x2000, scoped, tag = 'input window, operand 1, single buffered']
    #allocation6 [shape = 's32[1]{0}', space=sflag, size = 0x4, scoped, tag = 'scoped memory for tpu_custom_call.1']
    #allocation7 [shape = 'u8[8192]{0}', space=vmem, size = 0x2000, scoped, tag = 'output window, operand 0, single buffered']
    %7 = vsyncpa [#allocation3], 0
    %8 = vsyncpa [#allocation6], 0
    %9 = vsyncpa [#allocation4], 0
    // Predicated region
    $region2: #{tpu_custom_call.1} parent=1 // pred_check
      _
    $region3: #{tpu_custom_call.1} parent=1 // pred_check_branch
      %11 = sbr.rel (0) target = $region5
    $region4: #{tpu_custom_call.1} parent=1 // pred_region
      %s13 = ssub.s32 256, 256
      %14 = vsyncadd [#allocation3], %s13
      %s16 = sshll.u32 [#allocation2], 4
      %s17 = int_to_ptr.vmem [resolvable:$true] %s16
      %19 = dma.hbm_to_vmem [thread:$0]  %s0, 256, %s17, [#allocation3]
    $region5: #{tpu_custom_call.1} parent=1 // pred_fallthru
      _
    // Predicated region
    $region6: #{tpu_custom_call.1} parent=1 // pred_check
      _
    $region7: #{tpu_custom_call.1} parent=1 // pred_check_branch
      %21 = sbr.rel (0) target = $region9
    $region8: #{tpu_custom_call.1} parent=1 // pred_region
      %s23 = ssub.s32 256, 256
      %24 = vsyncadd [#allocation6], %s23
      %s26 = sshll.u32 [#allocation5], 4
      %s27 = int_to_ptr.vmem [resolvable:$true] %s26
      %29 = dma.hbm_to_vmem [thread:$0]  %s1, 256, %s27, [#allocation6]
    $region9: #{tpu_custom_call.1} parent=1 // pred_fallthru
      _
    // Predicated region
    $region10: #{tpu_custom_call.1} parent=1 // pred_check
      _
    $region11: #{tpu_custom_call.1} parent=1 // pred_check_branch
      %31 = sbr.rel (0) target = $region13
    $region12: #{tpu_custom_call.1} parent=1 // pred_region
      %32 = dma.done [#allocation3], 256
    $region13: #{tpu_custom_call.1} parent=1 // pred_fallthru
      _
    // Predicated region
    $region14: #{tpu_custom_call.1} parent=1 // pred_check
      _
    $region15: #{tpu_custom_call.1} parent=1 // pred_check_branch
      %34 = sbr.rel (0) target = $region17
    $region16: #{tpu_custom_call.1} parent=1 // pred_region
      %35 = dma.done [#allocation6], 256
    $region17: #{tpu_custom_call.1} parent=1 // pred_fallthru
      _
    %v36 = vld [vmem:[#allocation2] sm:$0xff]
    %v37 = vld [vmem:[#allocation2 + $0x8] sm:$0xff]
    %v38 = vmul.f32 %v36, %v36
    %v39 = vmul.f32 %v37, %v37
    %v42 = vcombine.high %v38, %v38
    %v43 = vcombine.high %v39, %v39
    %vm46 = vcmask 1043456
    %v47 = vsel %vm46, %v38, 0.0
    %v48 = vsel %vm46, %v42, 0.0
    %v49 = vadd.f32 %v47, %v48
    %v50 = vsel %vm46, %v39, 0.0
    %v51 = vadd.f32 %v49, %v50
    %v52 = vsel %vm46, %v43, 0.0
    %v53 = vadd.f32 %v51, %v52
    %54 = vadd.xlane.f32.xlu0 %v53
    %v55 = vpop.xlane.xlu0 %54
    %v56 = vrot.slane %v55, 4
    %v57 = vadd.f32 %v55, %v56
    %v58 = vrot.slane %v57, 2
    %v59 = vadd.f32 %v57, %v58
    %v60 = vrot.slane %v59, 1
    %v61 = vadd.f32 %v59, %v60
    %s62 = vtos %v61
    %s63 = smul.f32 %s62, 3.0808464e-05
    %v64 = vstv %s63
    %v65 = vrsqrt.pop %v64
    %v66 = vmul.f32 %v64, %v65
    %vm67 = vcmp.eq.f32.partialorder %v64, inf
    %v68 = vsel %vm67, %v64, %v66
    %vm69 = vcmp.eq.f32.partialorder %v64, 0.0
    %v70 = vand.u32 %v64, 2147483648
    %v71 = vsel %vm69, %v70, %v68
    %s72 = vtos %v71
    %v73 = vld [vmem:[#allocation5] sm:$0xff]
    %v74 = vld [vmem:[#allocation5 + $0x8] sm:$0xff]
    %v75 = vstv %s72
    %v76 = vmul.f32 %v73, %v75
    %v77 = vmul.f32 %v74, %v75
    %v78 = vadd.f32 %v36, %v76
    %v79 = vadd.f32 %v37, %v77
    %80 = vst [vmem:[#allocation7] sm:$0xff] %v78
    %81 = vst [vmem:[#allocation7 + $0x8] sm:$0xff] %v79
    // Predicated region
    $region18: #{tpu_custom_call.1} parent=1 // pred_check
      _
    $region19: #{tpu_custom_call.1} parent=1 // pred_check_branch
      %83 = sbr.rel (0) target = $region21
    $region20: #{tpu_custom_call.1} parent=1 // pred_region
      %s85 = ssub.s32 256, 256
      %86 = vsyncadd [#allocation4], %s85
      %s88 = sshll.u32 [#allocation7], 4
      %s89 = int_to_ptr.vmem [resolvable:$true] %s88
      %91 = dma.vmem_to_hbm [thread:$0]  %s89, 256, %s2, [#allocation4]
    $region21: #{tpu_custom_call.1} parent=1 // pred_fallthru
      _
    // Predicated region
    $region22: #{tpu_custom_call.1} parent=1 // pred_check
      _
    $region23: #{tpu_custom_call.1} parent=1 // pred_check_branch
      %93 = sbr.rel (0) target = $region25
    $region24: #{tpu_custom_call.1} parent=1 // pred_region
      %94 = dma.done [#allocation4], 256
    $region25: #{tpu_custom_call.1} parent=1 // pred_fallthru
      _
    %95 = vsyncpa [#allocation3], 1
    %96 = vsyncpa [#allocation6], 1
    %97 = vsyncpa [#allocation4], 1

</llo_original>
